<compile_context>
chip_gen: v6e
topology: v6e:2x2x1
jax: 0.10.0
libtpu: 0.0.40
codegen_flags: <defaults>
</compile_context>

<pallas_src>
import jax
import jax.numpy as jnp
from jax.experimental import pallas as pl
from jax.experimental.pallas import tpu as pltpu

_LANE = 128
_SUBLANE = 8


def _round_up(v, m):
    return (v + m - 1) // m * m


def _pad_to(a, shape):
    pads = [(0, t - s) for s, t in zip(a.shape, shape)]
    return jnp.pad(a, pads)


def _mlp_kernel(x_ref, w1_ref, b1_ref, w2_ref, b2_ref, w3_ref, b3_ref, o_ref, h1_ref):
    # Layer 1: Linear(input_dim, 256) + ReLU  (accumulate in f32, epilogue in f32)
    h1 = jnp.dot(x_ref[...], w1_ref[...], preferred_element_type=jnp.float32)
    h1 = jnp.maximum(h1 + b1_ref[...], 0.0)
    # Stage h1 explicitly in VMEM scratch (predictable regalloc for large tiles);
    # stored in the compute dtype so the next matmul runs the native MXU path.
    h1_ref[...] = h1.astype(h1_ref.dtype)

    # Layer 2: Linear(256, 128-padded) + ReLU
    h2 = jnp.dot(h1_ref[...], w2_ref[...], preferred_element_type=jnp.float32)
    h2 = jnp.maximum(h2 + b2_ref[...], 0.0)

    # Layer 3: Linear(128-padded, 128-padded)  -> lane-dense (TILE_M, 128) store
    o_ref[...] = (
        jnp.dot(h2.astype(w3_ref.dtype), w3_ref[...], preferred_element_type=jnp.float32)
        + b3_ref[...]
    )


def heartbeat_linear_probe(x, params, compute_dtype=jnp.bfloat16):
    """Forward pass of HeartbeatLinearProbe (inference: dropout = identity).

    params = (w1, b1, w2, b2, w3, b3) with weights in (in_features, out_features)
    layout and biases shaped (1, out_features).
    """
    w1, b1, w2, b2, w3, b3 = params
    B, D = x.shape
    H1 = w1.shape[1]            # 256
    H2 = w2.shape[1]            # 64
    C = w3.shape[1]             # num_classes

    # Lane-dense padded dims.
    D_pad = _round_up(D, _LANE)
    H2_pad = _round_up(H2, _LANE)
    C_pad = _round_up(C, _LANE)

    # Batch tiling: big tiles for pipelining, but never larger than the batch.
    TILE_M = 512 if B >= 512 else max(_SUBLANE, _round_up(B, _SUBLANE))
    B_pad = _round_up(B, TILE_M)
    num_tiles = B_pad // TILE_M

    # Pad + cast operands.  Zero padding is semantics-preserving:
    #  - padded x columns multiply zero w1 rows,
    #  - padded h2 lanes are ReLU(0 + 0) = 0 and hit zero w3 rows,
    #  - padded output columns are sliced off below.
    xp = _pad_to(x, (B_pad, D_pad)).astype(compute_dtype)
    w1p = _pad_to(w1, (D_pad, H1)).astype(compute_dtype)
    b1p = b1.astype(jnp.float32)
    w2p = _pad_to(w2, (H1, H2_pad)).astype(compute_dtype)
    b2p = _pad_to(b2, (1, H2_pad)).astype(jnp.float32)
    w3p = _pad_to(w3, (H2_pad, C_pad)).astype(compute_dtype)
    b3p = _pad_to(b3, (1, C_pad)).astype(jnp.float32)

    flops = 2 * B_pad * (D_pad * H1 + H1 * H2_pad + H2_pad * C_pad)
    bytes_accessed = (
        xp.size * xp.dtype.itemsize
        + sum(a.size * a.dtype.itemsize for a in (w1p, b1p, w2p, b2p, w3p, b3p))
        + B_pad * C_pad * 4
    )

    out = pl.pallas_call(
        _mlp_kernel,
        out_shape=jax.ShapeDtypeStruct((B_pad, C_pad), jnp.float32),
        grid=(num_tiles,),
        in_specs=[
            pl.BlockSpec((TILE_M, D_pad), lambda i: (i, 0)),   # x: tiled over batch
            pl.BlockSpec((D_pad, H1), lambda i: (0, 0)),       # w1: VMEM-resident
            pl.BlockSpec((1, H1), lambda i: (0, 0)),           # b1
            pl.BlockSpec((H1, H2_pad), lambda i: (0, 0)),      # w2 (padded)
            pl.BlockSpec((1, H2_pad), lambda i: (0, 0)),       # b2 (padded)
            pl.BlockSpec((H2_pad, C_pad), lambda i: (0, 0)),   # w3 (padded)
            pl.BlockSpec((1, C_pad), lambda i: (0, 0)),        # b3 (padded)
        ],
        out_specs=pl.BlockSpec((TILE_M, C_pad), lambda i: (i, 0)),
        scratch_shapes=[pltpu.VMEM((TILE_M, H1), compute_dtype)],  # staged h1
        compiler_params=pltpu.CompilerParams(
            dimension_semantics=("parallel",),        # megacore: shard batch tiles
            vmem_limit_bytes=32 * 1024 * 1024,        # safe on v5e/v6e/v7x
        ),
        cost_estimate=pl.CostEstimate(
            flops=flops, transcendentals=0, bytes_accessed=bytes_accessed
        ),
    )(xp, w1p, b1p, w2p, b2p, w3p, b3p)

    # Strip batch padding and the lane padding of the class dimension.
    return out[:B, :C]


def init_params(key, input_dim, num_classes=2):
    """Deterministic init mimicking nn.Linear default (U(-1/sqrt(fan_in), +))."""
    dims = [(input_dim, 256), (256, 64), (64, num_classes)]
    params = []
    for (fan_in, fan_out) in dims:
        key, kw, kb = jax.random.split(key, 3)
        bound = 1.0 / (fan_in ** 0.5)
        w = jax.random.uniform(kw, (fan_in, fan_out), jnp.float32, -bound, bound)
        b = jax.random.uniform(kb, (1, fan_out), jnp.float32, -bound, bound)
        params += [w, b]
    return tuple(params)


def reference_forward(x, params):
    """Pure-JAX reference for correctness check."""
    w1, b1, w2, b2, w3, b3 = params
    h1 = jnp.maximum(x @ w1 + b1, 0.0)
    h2 = jnp.maximum(h1 @ w2 + b2, 0.0)
    return h2 @ w3 + b3


if __name__ == "__main__":
    key = jax.random.PRNGKey(0)
    key, kx = jax.random.split(key)

    batch = 8
    input_dim = 128   # feature dim from the pre-trained encoder
    num_classes = 2

    x = jax.random.normal(kx, (batch, input_dim), jnp.float32)
    params = init_params(key, input_dim, num_classes)
    ref = reference_forward(x, params)

    # f32 compute path: strict numerics check against the pure-JAX reference.
    out_f32 = jax.block_until_ready(
        heartbeat_linear_probe(x, params, compute_dtype=jnp.float32)
    )
    assert out_f32.shape == (batch, num_classes)
    assert jnp.allclose(out_f32, ref, atol=1e-5, rtol=1e-5)

    # bf16 compute path (default, MXU-native): looser tolerance.
    out_bf16 = jax.block_until_ready(heartbeat_linear_probe(x, params))
    assert out_bf16.shape == (batch, num_classes)
    assert jnp.allclose(out_bf16, ref, atol=1e-1, rtol=1e-1)

    print("KERNEL_OK")
</pallas_src>

<mosaic_0001>
module attributes {stable_mosaic.version = 11 : i64} {
  func.func @_mlp_kernel(%arg0: i32, %arg1: memref<8x128xf32, #tpu.memory_space<vmem>>, %arg2: memref<128x256xf32, #tpu.memory_space<vmem>>, %arg3: memref<1x256xf32, #tpu.memory_space<vmem>>, %arg4: memref<256x128xf32, #tpu.memory_space<vmem>>, %arg5: memref<1x128xf32, #tpu.memory_space<vmem>>, %arg6: memref<128x128xf32, #tpu.memory_space<vmem>>, %arg7: memref<1x128xf32, #tpu.memory_space<vmem>>, %arg8: memref<8x128xf32, #tpu.memory_space<vmem>>, %arg9: memref<8x256xf32, #tpu.memory_space<vmem>>) attributes {dimension_semantics = [#tpu.dimension_semantics<parallel>], iteration_bounds = array<i64: 1>, scalar_prefetch = 0 : i64, scratch_operands = 1 : i64, tpu.core_type = #tpu.core_type<tc>, window_params = [{transform_indices = @transform_0, window_bounds = array<i64: 8, 128>}, {pipeline_mode = #tpu.pipeline_mode<synchronous>, transform_indices = @transform_1, window_bounds = array<i64: 128, 256>}, {pipeline_mode = #tpu.pipeline_mode<synchronous>, transform_indices = @transform_2, window_bounds = array<i64: 1, 256>}, {pipeline_mode = #tpu.pipeline_mode<synchronous>, transform_indices = @transform_3, window_bounds = array<i64: 256, 128>}, {pipeline_mode = #tpu.pipeline_mode<synchronous>, transform_indices = @transform_4, window_bounds = array<i64: 1, 128>}, {pipeline_mode = #tpu.pipeline_mode<synchronous>, transform_indices = @transform_5, window_bounds = array<i64: 128, 128>}, {pipeline_mode = #tpu.pipeline_mode<synchronous>, transform_indices = @transform_6, window_bounds = array<i64: 1, 128>}, {transform_indices = @transform_7, window_bounds = array<i64: 8, 128>}]} {
    %c0 = arith.constant 0 : index
    %c0_0 = arith.constant 0 : index
    %0 = vector.load %arg1[%c0, %c0_0] : memref<8x128xf32, #tpu.memory_space<vmem>>, vector<8x128xf32>
    %c0_1 = arith.constant 0 : index
    %c0_2 = arith.constant 0 : index
    %1 = vector.load %arg2[%c0_1, %c0_2] : memref<128x256xf32, #tpu.memory_space<vmem>>, vector<128x256xf32>
    %cst = arith.constant dense<0.000000e+00> : vector<8x256xf32>
    %2 = tpu.matmul %0, %1, %cst {dimension_numbers = #tpu.dot_dimension_numbers<[1], [0], [0], [1], [0, 0, 1, 1], [], []>} : vector<8x128xf32>, vector<128x256xf32>, vector<8x256xf32> -> vector<8x256xf32>
    %c0_3 = arith.constant 0 : index
    %c0_4 = arith.constant 0 : index
    %3 = vector.load %arg3[%c0_3, %c0_4] : memref<1x256xf32, #tpu.memory_space<vmem>>, vector<1x256xf32>
    %4 = vector.broadcast %3 : vector<1x256xf32> to vector<8x256xf32>
    %5 = arith.addf %2, %4 : vector<8x256xf32>
    %cst_5 = arith.constant 0.000000e+00 : f32
    %6 = vector.broadcast %cst_5 : f32 to vector<8x256xf32>
    %7 = arith.maximumf %5, %6 : vector<8x256xf32>
    %c0_6 = arith.constant 0 : index
    %c0_7 = arith.constant 0 : index
    %8 = vector.load %arg9[%c0_6, %c0_7] : memref<8x256xf32, #tpu.memory_space<vmem>>, vector<8x256xf32>
    tpu.vector_store %arg9[%c0_6, %c0_7], %7 {strides = array<i32>} : memref<8x256xf32, #tpu.memory_space<vmem>>, vector<8x256xf32>,
    %c0_8 = arith.constant 0 : index
    %c0_9 = arith.constant 0 : index
    %9 = vector.load %arg9[%c0_8, %c0_9] : memref<8x256xf32, #tpu.memory_space<vmem>>, vector<8x256xf32>
    %c0_10 = arith.constant 0 : index
    %c0_11 = arith.constant 0 : index
    %10 = vector.load %arg4[%c0_10, %c0_11] : memref<256x128xf32, #tpu.memory_space<vmem>>, vector<256x128xf32>
    %cst_12 = arith.constant dense<0.000000e+00> : vector<8x128xf32>
    %11 = tpu.matmul %9, %10, %cst_12 {dimension_numbers = #tpu.dot_dimension_numbers<[1], [0], [0], [1], [0, 0, 1, 1], [], []>} : vector<8x256xf32>, vector<256x128xf32>, vector<8x128xf32> -> vector<8x128xf32>
    %c0_13 = arith.constant 0 : index
    %c0_14 = arith.constant 0 : index
    %12 = vector.load %arg5[%c0_13, %c0_14] : memref<1x128xf32, #tpu.memory_space<vmem>>, vector<1x128xf32>
    %13 = vector.broadcast %12 : vector<1x128xf32> to vector<8x128xf32>
    %14 = arith.addf %11, %13 : vector<8x128xf32>
    %cst_15 = arith.constant 0.000000e+00 : f32
    %15 = vector.broadcast %cst_15 : f32 to vector<8x128xf32>
    %16 = arith.maximumf %14, %15 : vector<8x128xf32>
    %c0_16 = arith.constant 0 : index
    %c0_17 = arith.constant 0 : index
    %17 = vector.load %arg6[%c0_16, %c0_17] : memref<128x128xf32, #tpu.memory_space<vmem>>, vector<128x128xf32>
    %cst_18 = arith.constant dense<0.000000e+00> : vector<8x128xf32>
    %18 = tpu.matmul %16, %17, %cst_18 {dimension_numbers = #tpu.dot_dimension_numbers<[1], [0], [0], [1], [0, 0, 1, 1], [], []>} : vector<8x128xf32>, vector<128x128xf32>, vector<8x128xf32> -> vector<8x128xf32>
    %c0_19 = arith.constant 0 : index
    %c0_20 = arith.constant 0 : index
    %19 = vector.load %arg7[%c0_19, %c0_20] : memref<1x128xf32, #tpu.memory_space<vmem>>, vector<1x128xf32>
    %20 = vector.broadcast %19 : vector<1x128xf32> to vector<8x128xf32>
    %21 = arith.addf %18, %20 : vector<8x128xf32>
    %c0_21 = arith.constant 0 : index
    %c0_22 = arith.constant 0 : index
    %22 = vector.load %arg8[%c0_21, %c0_22] : memref<8x128xf32, #tpu.memory_space<vmem>>, vector<8x128xf32>
    tpu.vector_store %arg8[%c0_21, %c0_22], %21 {strides = array<i32>} : memref<8x128xf32, #tpu.memory_space<vmem>>, vector<8x128xf32>,
    return
  }
  func.func @transform_0(%arg0: i32) -> (i32, i32) {
    %c0_i32 = arith.constant 0 : i32
    %c0_i32_0 = arith.constant 0 : i32
    return %arg0, %c0_i32 : i32, i32
  }
  func.func @transform_1(%arg0: i32) -> (i32, i32) {
    %c0_i32 = arith.constant 0 : i32
    %c0_i32_0 = arith.constant 0 : i32
    %c0_i32_1 = arith.constant 0 : i32
    return %c0_i32, %c0_i32_0 : i32, i32
  }
  func.func @transform_2(%arg0: i32) -> (i32, i32) {
    %c0_i32 = arith.constant 0 : i32
    %c0_i32_0 = arith.constant 0 : i32
    %c0_i32_1 = arith.constant 0 : i32
    return %c0_i32, %c0_i32_0 : i32, i32
  }
  func.func @transform_3(%arg0: i32) -> (i32, i32) {
    %c0_i32 = arith.constant 0 : i32
    %c0_i32_0 = arith.constant 0 : i32
    %c0_i32_1 = arith.constant 0 : i32
    return %c0_i32, %c0_i32_0 : i32, i32
  }
  func.func @transform_4(%arg0: i32) -> (i32, i32) {
    %c0_i32 = arith.constant 0 : i32
    %c0_i32_0 = arith.constant 0 : i32
    %c0_i32_1 = arith.constant 0 : i32
    return %c0_i32, %c0_i32_0 : i32, i32
  }
  func.func @transform_5(%arg0: i32) -> (i32, i32) {
    %c0_i32 = arith.constant 0 : i32
    %c0_i32_0 = arith.constant 0 : i32
    %c0_i32_1 = arith.constant 0 : i32
    return %c0_i32, %c0_i32_0 : i32, i32
  }
  func.func @transform_6(%arg0: i32) -> (i32, i32) {
    %c0_i32 = arith.constant 0 : i32
    %c0_i32_0 = arith.constant 0 : i32
    %c0_i32_1 = arith.constant 0 : i32
    return %c0_i32, %c0_i32_0 : i32, i32
  }
  func.func @transform_7(%arg0: i32) -> (i32, i32) {
    %c0_i32 = arith.constant 0 : i32
    %c0_i32_0 = arith.constant 0 : i32
    return %arg0, %c0_i32 : i32, i32
  }
}

</mosaic_0001>

<llo_original>
// kernel: tpu_custom_call.1
$region0: #{tpu_custom_call.1}
  #allocation0 [shape = 'u32[]', space=smem, size = 0x4, offset = 0x4, fixed_abs, tag = 'smem constant byte address 0x4 - core index']
  #allocation1 [shape = 'u32[144,128]{1,0:T(1,128)}', space=vmem, size = 0x12000, scoped, tag = 'internal scratch']
  #allocation2 [shape = 'f32[8,256]{1,0:T(8,128)}', space=vmem, size = 0x2000, scoped, tag = 'scratch operand']
  %s0 = inlined_call_operand.hbm [shape: f32[8,128], index: 0, kind: input, shape index: {}]
  %s1 = inlined_call_operand.hbm [shape: f32[128,256], index: 1, kind: input, shape index: {}]
  %s2 = inlined_call_operand.vmem [shape: f32[1,256], index: 2, kind: input, shape index: {}]
  %s3 = inlined_call_operand.hbm [shape: f32[256,128], index: 3, kind: input, shape index: {}]
  %s4 = inlined_call_operand.vmem [shape: f32[1,128], index: 4, kind: input, shape index: {}]
  %s5 = inlined_call_operand.hbm [shape: f32[128,128], index: 5, kind: input, shape index: {}]
  %s6 = inlined_call_operand.vmem [shape: f32[1,128], index: 6, kind: input, shape index: {}]
  %s7 = inlined_call_operand.hbm [shape: f32[8,128], index: 7, kind: output, shape index: {}]
  %s8 = sld [smem:[#allocation0]]
  $region54: #{tpu_custom_call.1} parent=0
    _
  %s10 = ssub.s32 1, %s8
  %s11 = scalar_select 0, %s10, %s8
  $region1: #{tpu_custom_call.1} parent=0
    #allocation3 [shape = 'u8[4096]{0}', space=vmem, size = 0x1000, scoped, tag = 'input window, operand 0, single buffered']
    #allocation4 [shape = 's32[1]{0}', space=sflag, size = 0x4, scoped, tag = 'scoped memory for tpu_custom_call.1']
    #allocation5 [shape = 's32[1]{0}', space=sflag, size = 0x4, scoped, tag = 'scoped memory for tpu_custom_call.1']
    #allocation6 [shape = 'u8[131072]{0}', space=vmem, size = 0x20000, scoped, tag = 'input window, operand 1, single buffered']
    #allocation7 [shape = 's32[1]{0}', space=sflag, size = 0x4, scoped, tag = 'scoped memory for tpu_custom_call.1']
    #allocation8 [shape = 'u8[131072]{0}', space=vmem, size = 0x20000, scoped, tag = 'input window, operand 3, single buffered']
    #allocation9 [shape = 'u8[65536]{0}', space=vmem, size = 0x10000, scoped, tag = 'input window, operand 5, single buffered']
    #allocation10 [shape = 's32[1]{0}', space=sflag, size = 0x4, scoped, tag = 'scoped memory for tpu_custom_call.1']
    #allocation11 [shape = 'u8[4096]{0}', space=vmem, size = 0x1000, scoped, tag = 'output window, operand 0, single buffered']
    %12 = vsyncpa [#allocation4], 0
    %13 = vsyncpa [#allocation7], 0
    %14 = vsyncpa [#allocation10], 0
    %15 = vsyncpa [#allocation5], 0
    // Predicated region
    $region2: #{tpu_custom_call.1} parent=1 // pred_check
      _
    $region3: #{tpu_custom_call.1} parent=1 // pred_check_branch
      %17 = sbr.rel (0) target = $region5
    $region4: #{tpu_custom_call.1} parent=1 // pred_region
      %s19 = ssub.s32 128, 128
      %20 = vsyncadd [#allocation4], %s19
      %s22 = sshll.u32 [#allocation3], 4
      %s23 = int_to_ptr.vmem [resolvable:$true] %s22
      %25 = dma.hbm_to_vmem [thread:$0]  %s0, 128, %s23, [#allocation4]
    $region5: #{tpu_custom_call.1} parent=1 // pred_fallthru
      _
    // Predicated region
    $region6: #{tpu_custom_call.1} parent=1 // pred_check
      _
    $region7: #{tpu_custom_call.1} parent=1 // pred_check_branch
      %27 = sbr.rel (0) target = $region9
    $region8: #{tpu_custom_call.1} parent=1 // pred_region
      %s29 = ssub.s32 4096, 4096
      %30 = vsyncadd [#allocation7], %s29
      %s31 = sshll.u32 [#allocation6], 4
      %s32 = int_to_ptr.vmem [resolvable:$true] %s31
      %37 = dma.hbm_to_vmem [thread:$0]  %s1, 4096, %s32, [#allocation7], 256, 256, 16
    $region9: #{tpu_custom_call.1} parent=1 // pred_fallthru
      _
    // Predicated region
    $region10: #{tpu_custom_call.1} parent=1 // pred_check
      _
    $region11: #{tpu_custom_call.1} parent=1 // pred_check_branch
      %39 = sbr.rel (0) target = $region13
    $region12: #{tpu_custom_call.1} parent=1 // pred_region
      _
    $region13: #{tpu_custom_call.1} parent=1 // pred_fallthru
      _
    // Predicated region
    $region14: #{tpu_custom_call.1} parent=1 // pred_check
      _
    $region15: #{tpu_custom_call.1} parent=1 // pred_check_branch
      %41 = sbr.rel (0) target = $region17
    $region16: #{tpu_custom_call.1} parent=1 // pred_region
      %s43 = ssub.s32 4096, 4096
      %44 = vsyncadd [#allocation7], %s43
      %s45 = sshll.u32 [#allocation8], 4
      %s46 = int_to_ptr.vmem [resolvable:$true] %s45
      %51 = dma.hbm_to_vmem [thread:$0]  %s3, 4096, %s46, [#allocation7], 128, 128, 8
    $region17: #{tpu_custom_call.1} parent=1 // pred_fallthru
      _
    // Predicated region
    $region18: #{tpu_custom_call.1} parent=1 // pred_check
      _
    $region19: #{tpu_custom_call.1} parent=1 // pred_check_branch
      %53 = sbr.rel (0) target = $region21
    $region20: #{tpu_custom_call.1} parent=1 // pred_region
      _
    $region21: #{tpu_custom_call.1} parent=1 // pred_fallthru
      _
    // Predicated region
    $region22: #{tpu_custom_call.1} parent=1 // pred_check
      _
    $region23: #{tpu_custom_call.1} parent=1 // pred_check_branch
      %55 = sbr.rel (0) target = $region25
    $region24: #{tpu_custom_call.1} parent=1 // pred_region
      %s57 = ssub.s32 2048, 2048
      %58 = vsyncadd [#allocation10], %s57
      %s59 = sshll.u32 [#allocation9], 4
      %s60 = int_to_ptr.vmem [resolvable:$true] %s59
      %65 = dma.hbm_to_vmem [thread:$0]  %s5, 2048, %s60, [#allocation10], 128, 128, 8
    $region25: #{tpu_custom_call.1} parent=1 // pred_fallthru
      _
    // Predicated region
    $region26: #{tpu_custom_call.1} parent=1 // pred_check
      _
    $region27: #{tpu_custom_call.1} parent=1 // pred_check_branch
      %67 = sbr.rel (0) target = $region29
    $region28: #{tpu_custom_call.1} parent=1 // pred_region
      _
    $region29: #{tpu_custom_call.1} parent=1 // pred_fallthru
      _
    // Predicated region
    $region30: #{tpu_custom_call.1} parent=1 // pred_check
      _
    $region31: #{tpu_custom_call.1} parent=1 // pred_check_branch
      %69 = sbr.rel (0) target = $region33
    $region32: #{tpu_custom_call.1} parent=1 // pred_region
      %70 = dma.done [#allocation4], 128
    $region33: #{tpu_custom_call.1} parent=1 // pred_fallthru
      _
    // Predicated region
    $region34: #{tpu_custom_call.1} parent=1 // pred_check
      _
    $region35: #{tpu_custom_call.1} parent=1 // pred_check_branch
      %72 = sbr.rel (0) target = $region37
    $region36: #{tpu_custom_call.1} parent=1 // pred_region
      %73 = dma.done [#allocation7], 4096
    $region37: #{tpu_custom_call.1} parent=1 // pred_fallthru
      _
    // Predicated region
    $region38: #{tpu_custom_call.1} parent=1 // pred_check
      _
    $region39: #{tpu_custom_call.1} parent=1 // pred_check_branch
      %75 = sbr.rel (0) target = $region41
    $region40: #{tpu_custom_call.1} parent=1 // pred_region
      %76 = dma.done [#allocation7], 4096
    $region41: #{tpu_custom_call.1} parent=1 // pred_fallthru
      _
    // Predicated region
    $region42: #{tpu_custom_call.1} parent=1 // pred_check
      _
    $region43: #{tpu_custom_call.1} parent=1 // pred_check_branch
      %78 = sbr.rel (0) target = $region45
    $region44: #{tpu_custom_call.1} parent=1 // pred_region
      %79 = dma.done [#allocation10], 2048
    $region45: #{tpu_custom_call.1} parent=1 // pred_fallthru
      _
    %v80 = vld [vmem:[#allocation3] sm:$0xff]
    %v81 = vld [vmem:[#allocation6] sm:$0xff]
    %v82 = vld [vmem:[#allocation6 + $0x8] sm:$0xff]
    %v83 = vld [vmem:[#allocation6 + $0x10] sm:$0xff]
    %v84 = vld [vmem:[#allocation6 + $0x18] sm:$0xff]
    %v85 = vld [vmem:[#allocation6 + $0x20] sm:$0xff]
    %v86 = vld [vmem:[#allocation6 + $0x28] sm:$0xff]
    %v87 = vld [vmem:[#allocation6 + $0x30] sm:$0xff]
    %v88 = vld [vmem:[#allocation6 + $0x38] sm:$0xff]
    %v89 = vld [vmem:[#allocation6 + $0x40] sm:$0xff]
    %v90 = vld [vmem:[#allocation6 + $0x48] sm:$0xff]
    %v91 = vld [vmem:[#allocation6 + $0x50] sm:$0xff]
    %v92 = vld [vmem:[#allocation6 + $0x58] sm:$0xff]
    %v93 = vld [vmem:[#allocation6 + $0x60] sm:$0xff]
    %v94 = vld [vmem:[#allocation6 + $0x68] sm:$0xff]
    %v95 = vld [vmem:[#allocation6 + $0x70] sm:$0xff]
    %v96 = vld [vmem:[#allocation6 + $0x78] sm:$0xff]
    %v97 = vld [vmem:[#allocation6 + $0x80] sm:$0xff]
    %v98 = vld [vmem:[#allocation6 + $0x88] sm:$0xff]
    %v99 = vld [vmem:[#allocation6 + $0x90] sm:$0xff]
    %v100 = vld [vmem:[#allocation6 + $0x98] sm:$0xff]
    %v101 = vld [vmem:[#allocation6 + $0xa0] sm:$0xff]
    %v102 = vld [vmem:[#allocation6 + $0xa8] sm:$0xff]
    %v103 = vld [vmem:[#allocation6 + $0xb0] sm:$0xff]
    %v104 = vld [vmem:[#allocation6 + $0xb8] sm:$0xff]
    %v105 = vld [vmem:[#allocation6 + $0xc0] sm:$0xff]
    %v106 = vld [vmem:[#allocation6 + $0xc8] sm:$0xff]
    %v107 = vld [vmem:[#allocation6 + $0xd0] sm:$0xff]
    %v108 = vld [vmem:[#allocation6 + $0xd8] sm:$0xff]
    %v109 = vld [vmem:[#allocation6 + $0xe0] sm:$0xff]
    %v110 = vld [vmem:[#allocation6 + $0xe8] sm:$0xff]
    %v111 = vld [vmem:[#allocation6 + $0xf0] sm:$0xff]
    %v112 = vld [vmem:[#allocation6 + $0xf8] sm:$0xff]
    %v113 = vld [vmem:[%s2] sm:$0x3]
    %v115 = vlaneseq
    %v116 = vshrl.u32 %v115, 7
    %v117 = vsub.s32 0, %v116
    %v118 = vrot.slane %v113, %v117
    %v119 = vlaneseq
    %v120 = vshrl.u32 %v119, 7
    %v121 = vsub.s32 1, %v120
    %v122 = vrot.slane %v113, %v121
    %125 = vmatprep.subr.mxu0 %v112
    %126 = vmatpush1.msra.mxu0 %v111
    %127 = vmatprep.subr.mxu0 %v110
    %128 = vmatpush1.msra.mxu0 %v109
    %129 = vmatprep.subr.mxu0 %v108
    %130 = vmatpush1.msra.mxu0 %v107
    %131 = vmatprep.subr.mxu0 %v106
    %132 = vmatpush1.msra.mxu0 %v105
    %133 = vmatprep.subr.mxu0 %v104
    %134 = vmatpush1.msra.mxu0 %v103
    %135 = vmatprep.subr.mxu0 %v102
    %136 = vmatpush1.msra.mxu0 %v101
    %137 = vmatprep.subr.mxu0 %v100
    %138 = vmatpush1.msra.mxu0 %v99
    %139 = vmatprep.subr.mxu0 %v98
    %140 = vmatpush1.msra.mxu0 %v97
    %141 = vmatprep.subr.mxu0 %v96
    %142 = vmatpush1.msra.mxu0 %v95
    %143 = vmatprep.subr.mxu0 %v94
    %144 = vmatpush1.msra.mxu0 %v93
    %145 = vmatprep.subr.mxu0 %v92
    %146 = vmatpush1.msra.mxu0 %v91
    %147 = vmatprep.subr.mxu0 %v90
    %148 = vmatpush1.msra.mxu0 %v89
    %149 = vmatprep.subr.mxu0 %v88
    %150 = vmatpush1.msra.mxu0 %v87
    %151 = vmatprep.subr.mxu0 %v86
    %152 = vmatpush1.msra.mxu0 %v85
    %153 = vmatprep.subr.mxu0 %v84
    %154 = vmatpush1.msra.mxu0 %v83
    %155 = vmatprep.subr.mxu0 %v82
    %156 = vmatpush1.msra.mxu0 %v81
    %157 = vmatprep.subr.mxu0 0.0
    %158 = vmatpush2.msra.mxu0 0.0
    %159 = vmatprep.subr.mxu0 0.0
    %160 = vmatpush2.msra.mxu0 0.0
    %161 = vmatprep.subr.mxu0 0.0
    %162 = vmatpush2.msra.mxu0 0.0
    %163 = vmatprep.subr.mxu0 0.0
    %164 = vmatpush2.msra.mxu0 0.0
    %165 = vmatprep.subr.mxu0 0.0
    %166 = vmatpush2.msra.mxu0 0.0
    %167 = vmatprep.subr.mxu0 0.0
    %168 = vmatpush2.msra.mxu0 0.0
    %169 = vmatprep.subr.mxu0 0.0
    %170 = vmatpush2.msra.mxu0 0.0
    %171 = vmatprep.subr.mxu0 0.0
    %172 = vmatpush2.msra.mxu0 0.0
    %173 = vmatprep.subr.mxu0 0.0
    %174 = vmatpush2.msra.mxu0 0.0
    %175 = vmatprep.subr.mxu0 0.0
    %176 = vmatpush2.msra.mxu0 0.0
    %177 = vmatprep.subr.mxu0 0.0
    %178 = vmatpush2.msra.mxu0 0.0
    %179 = vmatprep.subr.mxu0 0.0
    %180 = vmatpush2.msra.mxu0 0.0
    %181 = vmatprep.subr.mxu0 0.0
    %182 = vmatpush2.msra.mxu0 0.0
    %183 = vmatprep.subr.mxu0 0.0
    %184 = vmatpush2.msra.mxu0 0.0
    %185 = vmatprep.subr.mxu0 0.0
    %186 = vmatpush2.msra.mxu0 0.0
    %187 = vmatprep.subr.mxu0 0.0
    %188 = vmatpush2.msra.mxu0 0.0
    %189 = vmatprep.mubr.f32.mxu0 0.0
    %190 = vmatmul.mubr.f32.gmra.mxu0 %v80
    %v191 = vpop.f32.mrf.mxu0
    %v192 = vadd.f32 %v118, %v191
    %v193 = vpop.f32.mrf.mxu0
    %v194 = vadd.f32 %v122, %v193
    %195 = vdwg.mxu0
    %v196 = vmax.f32 %v192, 0.0
    %v197 = vmax.f32 %v194, 0.0
    %198 = vst [vmem:[#allocation2] sm:$0xff] %v196
    %199 = vst [vmem:[#allocation2 + $0x8] sm:$0xff] %v197
    %v200 = vld [vmem:[#allocation2] sm:$0xff]
    %v201 = vld [vmem:[#allocation2 + $0x8] sm:$0xff]
    %v202 = vld [vmem:[#allocation8] sm:$0xff]
    %v203 = vld [vmem:[#allocation8 + $0x8] sm:$0xff]
    %v204 = vld [vmem:[#allocation8 + $0x10] sm:$0xff]
    %v205 = vld [vmem:[#allocation8 + $0x18] sm:$0xff]
    %v206 = vld [vmem:[#allocation8 + $0x20] sm:$0xff]
    %v207 = vld [vmem:[#allocation8 + $0x28] sm:$0xff]
    %v208 = vld [vmem:[#allocation8 + $0x30] sm:$0xff]
    %v209 = vld [vmem:[#allocation8 + $0x38] sm:$0xff]
    %v210 = vld [vmem:[#allocation8 + $0x40] sm:$0xff]
    %v211 = vld [vmem:[#allocation8 + $0x48] sm:$0xff]
    %v212 = vld [vmem:[#allocation8 + $0x50] sm:$0xff]
    %v213 = vld [vmem:[#allocation8 + $0x58] sm:$0xff]
    %v214 = vld [vmem:[#allocation8 + $0x60] sm:$0xff]
    %v215 = vld [vmem:[#allocation8 + $0x68] sm:$0xff]
    %v216 = vld [vmem:[#allocation8 + $0x70] sm:$0xff]
    %v217 = vld [vmem:[#allocation8 + $0x78] sm:$0xff]
    %v218 = vld [vmem:[#allocation8 + $0x80] sm:$0xff]
    %v219 = vld [vmem:[#allocation8 + $0x88] sm:$0xff]
    %v220 = vld [vmem:[#allocation8 + $0x90] sm:$0xff]
    %v221 = vld [vmem:[#allocation8 + $0x98] sm:$0xff]
    %v222 = vld [vmem:[#allocation8 + $0xa0] sm:$0xff]
    %v223 = vld [vmem:[#allocation8 + $0xa8] sm:$0xff]
    %v224 = vld [vmem:[#allocation8 + $0xb0] sm:$0xff]
    %v225 = vld [vmem:[#allocation8 + $0xb8] sm:$0xff]
    %v226 = vld [vmem:[#allocation8 + $0xc0] sm:$0xff]
    %v227 = vld [vmem:[#allocation8 + $0xc8] sm:$0xff]
    %v228 = vld [vmem:[#allocation8 + $0xd0] sm:$0xff]
    %v229 = vld [vmem:[#allocation8 + $0xd8] sm:$0xff]
    %v230 = vld [vmem:[#allocation8 + $0xe0] sm:$0xff]
    %v231 = vld [vmem:[#allocation8 + $0xe8] sm:$0xff]
    %v232 = vld [vmem:[#allocation8 + $0xf0] sm:$0xff]
    %v233 = vld [vmem:[#allocation8 + $0xf8] sm:$0xff]
    %v234 = vld [vmem:[%s4] sm:$0x1]
    %v236 = vlaneseq
    %v237 = vshrl.u32 %v236, 7
    %v238 = vsub.s32 0, %v237
    %v239 = vrot.slane %v234, %v238
    %241 = vmatprep.subr.mxu0 0.0
    %242 = vmatpush1.msra.mxu0 %v217
    %243 = vmatprep.subr.mxu0 0.0
    %244 = vmatpush1.msra.mxu0 %v216
    %245 = vmatprep.subr.mxu0 0.0
    %246 = vmatpush1.msra.mxu0 %v215
    %247 = vmatprep.subr.mxu0 0.0
    %248 = vmatpush1.msra.mxu0 %v214
    %249 = vmatprep.subr.mxu0 0.0
    %250 = vmatpush1.msra.mxu0 %v213
    %251 = vmatprep.subr.mxu0 0.0
    %252 = vmatpush1.msra.mxu0 %v212
    %253 = vmatprep.subr.mxu0 0.0
    %254 = vmatpush1.msra.mxu0 %v211
    %255 = vmatprep.subr.mxu0 0.0
    %256 = vmatpush1.msra.mxu0 %v210
    %257 = vmatprep.subr.mxu0 0.0
    %258 = vmatpush1.msra.mxu0 %v209
    %259 = vmatprep.subr.mxu0 0.0
    %260 = vmatpush1.msra.mxu0 %v208
    %261 = vmatprep.subr.mxu0 0.0
    %262 = vmatpush1.msra.mxu0 %v207
    %263 = vmatprep.subr.mxu0 0.0
    %264 = vmatpush1.msra.mxu0 %v206
    %265 = vmatprep.subr.mxu0 0.0
    %266 = vmatpush1.msra.mxu0 %v205
    %267 = vmatprep.subr.mxu0 0.0
    %268 = vmatpush1.msra.mxu0 %v204
    %269 = vmatprep.subr.mxu0 0.0
    %270 = vmatpush1.msra.mxu0 %v203
    %271 = vmatprep.subr.mxu0 0.0
    %272 = vmatpush1.msra.mxu0 %v202
    %273 = vmatprep.subr.mxu0 0.0
    %274 = vmatpush2.msra.mxu0 %v233
    %275 = vmatprep.subr.mxu0 0.0
    %276 = vmatpush2.msra.mxu0 %v232
    %277 = vmatprep.subr.mxu0 0.0
    %278 = vmatpush2.msra.mxu0 %v231
    %279 = vmatprep.subr.mxu0 0.0
    %280 = vmatpush2.msra.mxu0 %v230
    %281 = vmatprep.subr.mxu0 0.0
    %282 = vmatpush2.msra.mxu0 %v229
    %283 = vmatprep.subr.mxu0 0.0
    %284 = vmatpush2.msra.mxu0 %v228
    %285 = vmatprep.subr.mxu0 0.0
    %286 = vmatpush2.msra.mxu0 %v227
    %287 = vmatprep.subr.mxu0 0.0
    %288 = vmatpush2.msra.mxu0 %v226
    %289 = vmatprep.subr.mxu0 0.0
    %290 = vmatpush2.msra.mxu0 %v225
    %291 = vmatprep.subr.mxu0 0.0
    %292 = vmatpush2.msra.mxu0 %v224
    %293 = vmatprep.subr.mxu0 0.0
    %294 = vmatpush2.msra.mxu0 %v223
    %295 = vmatprep.subr.mxu0 0.0
    %296 = vmatpush2.msra.mxu0 %v222
    %297 = vmatprep.subr.mxu0 0.0
    %298 = vmatpush2.msra.mxu0 %v221
    %299 = vmatprep.subr.mxu0 0.0
    %300 = vmatpush2.msra.mxu0 %v220
    %301 = vmatprep.subr.mxu0 0.0
    %302 = vmatpush2.msra.mxu0 %v219
    %303 = vmatprep.subr.mxu0 0.0
    %304 = vmatpush2.msra.mxu0 %v218
    %305 = vmatprep.mubr.f32.mxu0 %v201
    %306 = vmatmul.mubr.f32.gmra.mxu0 %v200
    %v307 = vpop.f32.mrf.mxu0
    %v308 = vadd.f32 %v239, %v307
    %v309 = vpop.f32.mrf.mxu0
    %310 = vdwg.mxu0
    %v311 = vmax.f32 %v308, 0.0
    %v312 = vld [vmem:[#allocation9] sm:$0xff]
    %v313 = vld [vmem:[#allocation9 + $0x8] sm:$0xff]
    %v314 = vld [vmem:[#allocation9 + $0x10] sm:$0xff]
    %v315 = vld [vmem:[#allocation9 + $0x18] sm:$0xff]
    %v316 = vld [vmem:[#allocation9 + $0x20] sm:$0xff]
    %v317 = vld [vmem:[#allocation9 + $0x28] sm:$0xff]
    %v318 = vld [vmem:[#allocation9 + $0x30] sm:$0xff]
    %v319 = vld [vmem:[#allocation9 + $0x38] sm:$0xff]
    %v320 = vld [vmem:[#allocation9 + $0x40] sm:$0xff]
    %v321 = vld [vmem:[#allocation9 + $0x48] sm:$0xff]
    %v322 = vld [vmem:[#allocation9 + $0x50] sm:$0xff]
    %v323 = vld [vmem:[#allocation9 + $0x58] sm:$0xff]
    %v324 = vld [vmem:[#allocation9 + $0x60] sm:$0xff]
    %v325 = vld [vmem:[#allocation9 + $0x68] sm:$0xff]
    %v326 = vld [vmem:[#allocation9 + $0x70] sm:$0xff]
    %v327 = vld [vmem:[#allocation9 + $0x78] sm:$0xff]
    %v328 = vld [vmem:[%s6] sm:$0x1]
    %v330 = vlaneseq
    %v331 = vshrl.u32 %v330, 7
    %v332 = vsub.s32 0, %v331
    %v333 = vrot.slane %v328, %v332
    %335 = vmatprep.subr.mxu0 0.0
    %336 = vmatpush1.msra.mxu0 %v327
    %337 = vmatprep.subr.mxu0 0.0
    %338 = vmatpush1.msra.mxu0 %v326
    %339 = vmatprep.subr.mxu0 0.0
    %340 = vmatpush1.msra.mxu0 %v325
    %341 = vmatprep.subr.mxu0 0.0
    %342 = vmatpush1.msra.mxu0 %v324
    %343 = vmatprep.subr.mxu0 0.0
    %344 = vmatpush1.msra.mxu0 %v323
    %345 = vmatprep.subr.mxu0 0.0
    %346 = vmatpush1.msra.mxu0 %v322
    %347 = vmatprep.subr.mxu0 0.0
    %348 = vmatpush1.msra.mxu0 %v321
    %349 = vmatprep.subr.mxu0 0.0
    %350 = vmatpush1.msra.mxu0 %v320
    %351 = vmatprep.subr.mxu0 0.0
    %352 = vmatpush1.msra.mxu0 %v319
    %353 = vmatprep.subr.mxu0 0.0
    %354 = vmatpush1.msra.mxu0 %v318
    %355 = vmatprep.subr.mxu0 0.0
    %356 = vmatpush1.msra.mxu0 %v317
    %357 = vmatprep.subr.mxu0 0.0
    %358 = vmatpush1.msra.mxu0 %v316
    %359 = vmatprep.subr.mxu0 0.0
    %360 = vmatpush1.msra.mxu0 %v315
    %361 = vmatprep.subr.mxu0 0.0
    %362 = vmatpush1.msra.mxu0 %v314
    %363 = vmatprep.subr.mxu0 0.0
    %364 = vmatpush1.msra.mxu0 %v313
    %365 = vmatprep.subr.mxu0 0.0
    %366 = vmatpush1.msra.mxu0 %v312
    %367 = vmatprep.subr.mxu0 0.0
    %368 = vmatpush2.msra.mxu0 0.0
    %369 = vmatprep.subr.mxu0 0.0
    %370 = vmatpush2.msra.mxu0 0.0
    %371 = vmatprep.subr.mxu0 0.0
    %372 = vmatpush2.msra.mxu0 0.0
    %373 = vmatprep.subr.mxu0 0.0
    %374 = vmatpush2.msra.mxu0 0.0
    %375 = vmatprep.subr.mxu0 0.0
    %376 = vmatpush2.msra.mxu0 0.0
    %377 = vmatprep.subr.mxu0 0.0
    %378 = vmatpush2.msra.mxu0 0.0
    %379 = vmatprep.subr.mxu0 0.0
    %380 = vmatpush2.msra.mxu0 0.0
    %381 = vmatprep.subr.mxu0 0.0
    %382 = vmatpush2.msra.mxu0 0.0
    %383 = vmatprep.subr.mxu0 0.0
    %384 = vmatpush2.msra.mxu0 0.0
    %385 = vmatprep.subr.mxu0 0.0
    %386 = vmatpush2.msra.mxu0 0.0
    %387 = vmatprep.subr.mxu0 0.0
    %388 = vmatpush2.msra.mxu0 0.0
    %389 = vmatprep.subr.mxu0 0.0
    %390 = vmatpush2.msra.mxu0 0.0
    %391 = vmatprep.subr.mxu0 0.0
    %392 = vmatpush2.msra.mxu0 0.0
    %393 = vmatprep.subr.mxu0 0.0
    %394 = vmatpush2.msra.mxu0 0.0
    %395 = vmatprep.subr.mxu0 0.0
    %396 = vmatpush2.msra.mxu0 0.0
    %397 = vmatprep.subr.mxu0 0.0
    %398 = vmatpush2.msra.mxu0 0.0
    %399 = vmatprep.mubr.f32.mxu0 0.0
    %400 = vmatmul.mubr.f32.gmra.mxu0 %v311
    %v401 = vpop.f32.mrf.mxu0
    %v402 = vadd.f32 %v333, %v401
    %v403 = vpop.f32.mrf.mxu0
    %404 = vdwg.mxu0
    %405 = vst [vmem:[#allocation11] sm:$0xff] %v402
    // Predicated region
    $region46: #{tpu_custom_call.1} parent=1 // pred_check
      _
    $region47: #{tpu_custom_call.1} parent=1 // pred_check_branch
      %407 = sbr.rel (0) target = $region49
    $region48: #{tpu_custom_call.1} parent=1 // pred_region
      %s409 = ssub.s32 128, 128
      %410 = vsyncadd [#allocation5], %s409
      %s412 = sshll.u32 [#allocation11], 4
      %s413 = int_to_ptr.vmem [resolvable:$true] %s412
      %415 = dma.vmem_to_hbm [thread:$0]  %s413, 128, %s7, [#allocation5]
    $region49: #{tpu_custom_call.1} parent=1 // pred_fallthru
      _
    // Predicated region
    $region50: #{tpu_custom_call.1} parent=1 // pred_check
      _
    $region51: #{tpu_custom_call.1} parent=1 // pred_check_branch
      %417 = sbr.rel (0) target = $region53
    $region52: #{tpu_custom_call.1} parent=1 // pred_region
      %418 = dma.done [#allocation5], 128
    $region53: #{tpu_custom_call.1} parent=1 // pred_fallthru
      _
    %419 = vsyncpa [#allocation4], 1
    %420 = vsyncpa [#allocation7], 1
    %421 = vsyncpa [#allocation10], 1
    %422 = vsyncpa [#allocation5], 1

</llo_original>
